<compile_context>
chip_gen: v6e
topology: v6e:2x2x1
jax: 0.10.0
libtpu: 0.0.40
codegen_flags: <defaults>
</compile_context>

<pallas_src>
import functools

import jax
import jax.numpy as jnp
import numpy as np
from jax.experimental import pallas as pl
from jax.experimental.pallas import tpu as pltpu

_LANE = 128        # TPU lane width; classifier output padded to this
_K_IN = 128        # input-channel contraction dim padded 40 -> 128
_TB_MAX = 256      # max batch-tile rows (MXU-friendly, bounds per-step VMEM)
_NEG_INF = -1e30   # bias pad value -> exp underflows to exactly 0.0 in f32


def _round_up(x, m):
    return ((x + m - 1) // m) * m


def _choose_batch_tiling(batch):
    """Pad batch to a bf16-sublane multiple (16) and pick the batch tile."""
    b_pad = _round_up(batch, 16)
    if b_pad <= _TB_MAX:
        return b_pad, b_pad            # single tile
    b_pad = _round_up(batch, _TB_MAX)
    return b_pad, _TB_MAX


# ----------------------------- Pallas kernel ------------------------------- #

def _fused_forward_kernel(x_ref, w1_ref, b1_ref, w2_ref, b2_ref,
                          w3_ref, b3_ref, wc_ref, bc_ref, o_ref):
    """conv1 + conv2 + conv3 (center-tap matmuls) + classifier + softmax.

    Matmul inputs are bf16 (MXU-native), accumulation and all elementwise math
    (bias, ReLU, softmax) are f32.
    """
    # conv1d1 (40->128) + ReLU   (Dropout / MaxPool1d(1) are identity)
    h = jnp.dot(x_ref[...], w1_ref[...], preferred_element_type=jnp.float32)
    h = jnp.maximum(h + b1_ref[...], 0.0)
    # conv1d2 (128->256) + ReLU
    h = jnp.dot(h.astype(jnp.bfloat16), w2_ref[...],
                preferred_element_type=jnp.float32)
    h = jnp.maximum(h + b2_ref[...], 0.0)
    # conv1d3 (256->512) + ReLU
    h = jnp.dot(h.astype(jnp.bfloat16), w3_ref[...],
                preferred_element_type=jnp.float32)
    h = jnp.maximum(h + b3_ref[...], 0.0)
    # classifier linear (512 -> 128 lane-padded classes) + softmax
    logits = jnp.dot(h.astype(jnp.bfloat16), wc_ref[...],
                     preferred_element_type=jnp.float32)
    logits = logits + bc_ref[...]
    m = jnp.max(logits, axis=-1, keepdims=True)
    e = jnp.exp(logits - m)
    denom = jnp.sum(e, axis=-1, keepdims=True)
    # Exact normalization (rows sum to 1 within f32 rounding).
    o_ref[...] = (e / denom).astype(o_ref.dtype)


def _fused_forward(x2d, p, tb):
    """x2d: [B_pad, 128] bf16 (padded); p: prepared (repacked) params."""
    b_pad, k_in = x2d.shape
    grid = (b_pad // tb,)
    weight_args = (p["w1"], p["b1"], p["w2"], p["b2"],
                   p["w3"], p["b3"], p["wc"], p["bc"])
    # Activations are batch-tiled; weights/biases are full-array VMEM-resident
    # blocks (constant index maps) so they are not re-fetched per grid step.
    # TODO(synk): on v7x, pipeline_mode=pl.Buffered(1) on the weight specs would
    # avoid double-buffering the grid-invariant weights (minor VMEM saving).
    # TODO(synk): for repeated tiny-batch calls, keep weights resident across
    # pallas_calls via semaphore/VMEM-ref futures instead of re-DMAing.
    in_specs = [pl.BlockSpec((tb, k_in), lambda i: (i, 0))]
    in_specs += [pl.BlockSpec(w.shape, lambda i: (0, 0)) for w in weight_args]
    return pl.pallas_call(
        _fused_forward_kernel,
        out_shape=jax.ShapeDtypeStruct((b_pad, _LANE), jnp.float32),
        grid=grid,
        in_specs=in_specs,
        out_specs=pl.BlockSpec((tb, _LANE), lambda i: (i, 0)),
        compiler_params=pltpu.CompilerParams(
            dimension_semantics=("parallel",),      # shard batch tiles over TCs
            vmem_limit_bytes=32 * 1024 * 1024,      # portable cap (v5e/v6e/v7x)
        ),
    )(x2d, *weight_args)


# --------------------------- Parameter handling ----------------------------- #

def init_params(num_classes=6, dtype=jnp.float32):
    """PyTorch-layout parameters (Conv1d: [C_out, C_in, K]; Linear: [out, in])."""
    key = jax.random.PRNGKey(0)
    ks = jax.random.split(key, 8)

    def conv_init(kw, kb, c_out, c_in, k):
        bound = 1.0 / np.sqrt(c_in * k)
        w = jax.random.uniform(kw, (c_out, c_in, k), dtype, -bound, bound)
        b = jax.random.uniform(kb, (c_out,), dtype, -bound, bound)
        return w, b

    w1, b1 = conv_init(ks[0], ks[1], 128, 40, 3)
    w2, b2 = conv_init(ks[2], ks[3], 256, 128, 5)
    w3, b3 = conv_init(ks[4], ks[5], 512, 256, 3)
    bound = 1.0 / np.sqrt(512)
    wc = jax.random.uniform(ks[6], (num_classes, 512), dtype, -bound, bound)
    bc = jax.random.uniform(ks[7], (num_classes,), dtype, -bound, bound)
    return dict(w1=w1, b1=b1, w2=w2, b2=b2, w3=w3, b3=b3, wc=wc, bc=bc)


def prepare_inference_params(params, num_classes):
    """One-time repack of PyTorch-layout weights into the fused-kernel layout.

    * keep only the center conv tap (the only nonzero contribution at L == 1;
      requires odd K, asserted below),
    * pre-transpose to [K, N] matmul layout and cast weights to bf16,
    * zero-pad the first contraction dim 40 -> 128 (lane/MXU-K aligned),
    * pad the classifier to a lane-dense 128-wide output (bias pad = -1e30),
    * biases stay f32 (elementwise chain runs f32; v5e has no bf16 VPU).
    """
    def center_t(w):  # [C_out, C_in, K] -> [C_in, C_out] (center tap)
        k = w.shape[-1]
        assert k % 2 == 1, "center-tap reduction requires an odd kernel size"
        return jnp.transpose(w[:, :, k // 2])

    w1 = center_t(params["w1"])                       # [40, 128]
    w1 = jnp.pad(w1, ((0, _K_IN - w1.shape[0]), (0, 0)))   # -> [128, 128]

    feat = params["wc"].shape[1]  # 512
    wc_pad = jnp.zeros((feat, _LANE), jnp.float32)
    wc_pad = wc_pad.at[:, :num_classes].set(params["wc"].T)
    bc_pad = jnp.full((1, _LANE), _NEG_INF, jnp.float32)
    bc_pad = bc_pad.at[0, :num_classes].set(params["bc"])

    bf16 = lambda w: w.astype(jnp.bfloat16)
    f32 = lambda b: b.reshape(1, -1).astype(jnp.float32)
    return dict(
        w1=bf16(w1), b1=f32(params["b1"]),
        w2=bf16(center_t(params["w2"])), b2=f32(params["b2"]),
        w3=bf16(center_t(params["w3"])), b3=f32(params["b3"]),
        wc=bf16(wc_pad), bc=bc_pad,
    )


def cnn_classifier_forward(x, prep, num_classes):
    """x: [B, 40, L] (PyTorch NCL). Requires L == 1 (Flatten -> Linear(512))."""
    B, c_in, L = x.shape
    assert L == 1, "CnnClassifier needs L == 1: Flatten([B,512,L]) feeds Linear(512)."
    b_pad, tb = _choose_batch_tiling(B)
    x2d = x.reshape(B, c_in)
    # Pad rows to the batch tile and the contraction dim 40 -> 128, cast bf16.
    x2d = jnp.pad(x2d, ((0, b_pad - B), (0, _K_IN - c_in))).astype(jnp.bfloat16)
    out_padded = _fused_forward(x2d, prep, tb)     # [B_pad, 128] lane-dense f32
    return out_padded[:B, :num_classes]            # [B, num_classes]


# ------------------------------ Reference ----------------------------------- #

def _reference_forward(x, params):
    """Plain-JAX (f32) replica of the PyTorch forward (full 'same' convs)."""
    def conv(h, w, b):
        y = jax.lax.conv_general_dilated(
            h, w, window_strides=(1,), padding="SAME",
            dimension_numbers=("NCH", "OIH", "NCH"))
        return jnp.maximum(y + b[None, :, None], 0.0)

    h = conv(x, params["w1"], params["b1"])
    h = conv(h, params["w2"], params["b2"])
    h = conv(h, params["w3"], params["b3"])
    flat = h.reshape(h.shape[0], -1)
    logits = flat @ params["wc"].T + params["bc"]
    return jax.nn.softmax(logits, axis=1)


# -------------------------------- Main --------------------------------------- #

if __name__ == "__main__":
    num_classes = 6
    params = init_params(num_classes)
    prep = prepare_inference_params(params, num_classes)   # one-time repack

    # Input: [batch=2, channels=40, length=1] (length must be 1: Flatten -> 512 feats).
    x = jax.random.normal(jax.random.PRNGKey(0), (2, 40, 1), dtype=jnp.float32)

    fwd = jax.jit(functools.partial(cnn_classifier_forward, num_classes=num_classes))
    out = jax.block_until_ready(fwd(x, prep))

    ref = jax.block_until_ready(_reference_forward(x, params))
    # Tolerance accounts for bf16 weight/activation storage (f32 MXU accumulation).
    np.testing.assert_allclose(np.asarray(out), np.asarray(ref), atol=2e-2, rtol=2e-2)
    assert out.shape == (2, num_classes)
    # Exact softmax normalization -> rows sum to 1 within f32 rounding.
    np.testing.assert_allclose(np.asarray(out).sum(axis=1), np.ones(2), rtol=0, atol=1e-5)

    print("KERNEL_OK")
</pallas_src>

<mosaic_0001>
module attributes {stable_mosaic.version = 11 : i64} {
  func.func @_fused_forward_kernel(%arg0: i32, %arg1: memref<16x128xbf16, #tpu.memory_space<vmem>>, %arg2: memref<128x128xbf16, #tpu.memory_space<vmem>>, %arg3: memref<1x128xf32, #tpu.memory_space<vmem>>, %arg4: memref<128x256xbf16, #tpu.memory_space<vmem>>, %arg5: memref<1x256xf32, #tpu.memory_space<vmem>>, %arg6: memref<256x512xbf16, #tpu.memory_space<vmem>>, %arg7: memref<1x512xf32, #tpu.memory_space<vmem>>, %arg8: memref<512x128xbf16, #tpu.memory_space<vmem>>, %arg9: memref<1x128xf32, #tpu.memory_space<vmem>>, %arg10: memref<16x128xf32, #tpu.memory_space<vmem>>) attributes {dimension_semantics = [#tpu.dimension_semantics<parallel>], iteration_bounds = array<i64: 1>, scalar_prefetch = 0 : i64, scratch_operands = 0 : i64, tpu.core_type = #tpu.core_type<tc>, window_params = [{transform_indices = @transform_0, window_bounds = array<i64: 16, 128>}, {pipeline_mode = #tpu.pipeline_mode<synchronous>, transform_indices = @transform_1, window_bounds = array<i64: 128, 128>}, {pipeline_mode = #tpu.pipeline_mode<synchronous>, transform_indices = @transform_2, window_bounds = array<i64: 1, 128>}, {pipeline_mode = #tpu.pipeline_mode<synchronous>, transform_indices = @transform_3, window_bounds = array<i64: 128, 256>}, {pipeline_mode = #tpu.pipeline_mode<synchronous>, transform_indices = @transform_4, window_bounds = array<i64: 1, 256>}, {pipeline_mode = #tpu.pipeline_mode<synchronous>, transform_indices = @transform_5, window_bounds = array<i64: 256, 512>}, {pipeline_mode = #tpu.pipeline_mode<synchronous>, transform_indices = @transform_6, window_bounds = array<i64: 1, 512>}, {pipeline_mode = #tpu.pipeline_mode<synchronous>, transform_indices = @transform_7, window_bounds = array<i64: 512, 128>}, {pipeline_mode = #tpu.pipeline_mode<synchronous>, transform_indices = @transform_8, window_bounds = array<i64: 1, 128>}, {transform_indices = @transform_9, window_bounds = array<i64: 16, 128>}]} {
    %c0 = arith.constant 0 : index
    %c0_0 = arith.constant 0 : index
    %0 = vector.load %arg1[%c0, %c0_0] : memref<16x128xbf16, #tpu.memory_space<vmem>>, vector<16x128xbf16>
    %c0_1 = arith.constant 0 : index
    %c0_2 = arith.constant 0 : index
    %1 = vector.load %arg2[%c0_1, %c0_2] : memref<128x128xbf16, #tpu.memory_space<vmem>>, vector<128x128xbf16>
    %cst = arith.constant dense<0.000000e+00> : vector<16x128xf32>
    %2 = tpu.matmul %0, %1, %cst {dimension_numbers = #tpu.dot_dimension_numbers<[1], [0], [0], [1], [0, 0, 1, 1], [], []>} : vector<16x128xbf16>, vector<128x128xbf16>, vector<16x128xf32> -> vector<16x128xf32>
    %c0_3 = arith.constant 0 : index
    %c0_4 = arith.constant 0 : index
    %3 = vector.load %arg3[%c0_3, %c0_4] : memref<1x128xf32, #tpu.memory_space<vmem>>, vector<1x128xf32>
    %4 = vector.broadcast %3 : vector<1x128xf32> to vector<16x128xf32>
    %5 = arith.addf %2, %4 : vector<16x128xf32>
    %cst_5 = arith.constant 0.000000e+00 : f32
    %6 = vector.broadcast %cst_5 : f32 to vector<16x128xf32>
    %7 = arith.maximumf %5, %6 : vector<16x128xf32>
    %8 = arith.truncf %7 : vector<16x128xf32> to vector<16x128xbf16>
    %c0_6 = arith.constant 0 : index
    %c0_7 = arith.constant 0 : index
    %9 = vector.load %arg4[%c0_6, %c0_7] : memref<128x256xbf16, #tpu.memory_space<vmem>>, vector<128x256xbf16>
    %cst_8 = arith.constant dense<0.000000e+00> : vector<16x256xf32>
    %10 = tpu.matmul %8, %9, %cst_8 {dimension_numbers = #tpu.dot_dimension_numbers<[1], [0], [0], [1], [0, 0, 1, 1], [], []>} : vector<16x128xbf16>, vector<128x256xbf16>, vector<16x256xf32> -> vector<16x256xf32>
    %c0_9 = arith.constant 0 : index
    %c0_10 = arith.constant 0 : index
    %11 = vector.load %arg5[%c0_9, %c0_10] : memref<1x256xf32, #tpu.memory_space<vmem>>, vector<1x256xf32>
    %12 = vector.broadcast %11 : vector<1x256xf32> to vector<16x256xf32>
    %13 = arith.addf %10, %12 : vector<16x256xf32>
    %cst_11 = arith.constant 0.000000e+00 : f32
    %14 = vector.broadcast %cst_11 : f32 to vector<16x256xf32>
    %15 = arith.maximumf %13, %14 : vector<16x256xf32>
    %16 = arith.truncf %15 : vector<16x256xf32> to vector<16x256xbf16>
    %c0_12 = arith.constant 0 : index
    %c0_13 = arith.constant 0 : index
    %17 = vector.load %arg6[%c0_12, %c0_13] : memref<256x512xbf16, #tpu.memory_space<vmem>>, vector<256x512xbf16>
    %cst_14 = arith.constant dense<0.000000e+00> : vector<16x512xf32>
    %18 = tpu.matmul %16, %17, %cst_14 {dimension_numbers = #tpu.dot_dimension_numbers<[1], [0], [0], [1], [0, 0, 1, 1], [], []>} : vector<16x256xbf16>, vector<256x512xbf16>, vector<16x512xf32> -> vector<16x512xf32>
    %c0_15 = arith.constant 0 : index
    %c0_16 = arith.constant 0 : index
    %19 = vector.load %arg7[%c0_15, %c0_16] : memref<1x512xf32, #tpu.memory_space<vmem>>, vector<1x512xf32>
    %20 = vector.broadcast %19 : vector<1x512xf32> to vector<16x512xf32>
    %21 = arith.addf %18, %20 : vector<16x512xf32>
    %cst_17 = arith.constant 0.000000e+00 : f32
    %22 = vector.broadcast %cst_17 : f32 to vector<16x512xf32>
    %23 = arith.maximumf %21, %22 : vector<16x512xf32>
    %24 = arith.truncf %23 : vector<16x512xf32> to vector<16x512xbf16>
    %c0_18 = arith.constant 0 : index
    %c0_19 = arith.constant 0 : index
    %25 = vector.load %arg8[%c0_18, %c0_19] : memref<512x128xbf16, #tpu.memory_space<vmem>>, vector<512x128xbf16>
    %cst_20 = arith.constant dense<0.000000e+00> : vector<16x128xf32>
    %26 = tpu.matmul %24, %25, %cst_20 {dimension_numbers = #tpu.dot_dimension_numbers<[1], [0], [0], [1], [0, 0, 1, 1], [], []>} : vector<16x512xbf16>, vector<512x128xbf16>, vector<16x128xf32> -> vector<16x128xf32>
    %c0_21 = arith.constant 0 : index
    %c0_22 = arith.constant 0 : index
    %27 = vector.load %arg9[%c0_21, %c0_22] : memref<1x128xf32, #tpu.memory_space<vmem>>, vector<1x128xf32>
    %28 = vector.broadcast %27 : vector<1x128xf32> to vector<16x128xf32>
    %29 = arith.addf %26, %28 : vector<16x128xf32>
    %cst_23 = arith.constant dense<0xFF800000> : vector<16xf32>
    %30 = vector.multi_reduction <maximumf>, %29, %cst_23 [1] : vector<16x128xf32> to vector<16xf32>
    %31 = vector.shape_cast %30 : vector<16xf32> to vector<16x1xf32>
    %32 = vector.broadcast %31 : vector<16x1xf32> to vector<16x128xf32>
    %33 = arith.subf %29, %32 : vector<16x128xf32>
    %34 = math.exp %33 : vector<16x128xf32>
    %cst_24 = arith.constant dense<0.000000e+00> : vector<16xf32>
    %35 = vector.multi_reduction <add>, %34, %cst_24 [1] : vector<16x128xf32> to vector<16xf32>
    %36 = vector.shape_cast %35 : vector<16xf32> to vector<16x1xf32>
    %37 = vector.broadcast %36 : vector<16x1xf32> to vector<16x128xf32>
    %38 = arith.divf %34, %37 : vector<16x128xf32>
    %c0_25 = arith.constant 0 : index
    %c0_26 = arith.constant 0 : index
    %39 = vector.load %arg10[%c0_25, %c0_26] : memref<16x128xf32, #tpu.memory_space<vmem>>, vector<16x128xf32>
    tpu.vector_store %arg10[%c0_25, %c0_26], %38 {strides = array<i32>} : memref<16x128xf32, #tpu.memory_space<vmem>>, vector<16x128xf32>,
    return
  }
  func.func @transform_0(%arg0: i32) -> (i32, i32) {
    %c0_i32 = arith.constant 0 : i32
    %c0_i32_0 = arith.constant 0 : i32
    return %arg0, %c0_i32 : i32, i32
  }
  func.func @transform_1(%arg0: i32) -> (i32, i32) {
    %c0_i32 = arith.constant 0 : i32
    %c0_i32_0 = arith.constant 0 : i32
    %c0_i32_1 = arith.constant 0 : i32
    return %c0_i32, %c0_i32_0 : i32, i32
  }
  func.func @transform_2(%arg0: i32) -> (i32, i32) {
    %c0_i32 = arith.constant 0 : i32
    %c0_i32_0 = arith.constant 0 : i32
    %c0_i32_1 = arith.constant 0 : i32
    return %c0_i32, %c0_i32_0 : i32, i32
  }
  func.func @transform_3(%arg0: i32) -> (i32, i32) {
    %c0_i32 = arith.constant 0 : i32
    %c0_i32_0 = arith.constant 0 : i32
    %c0_i32_1 = arith.constant 0 : i32
    return %c0_i32, %c0_i32_0 : i32, i32
  }
  func.func @transform_4(%arg0: i32) -> (i32, i32) {
    %c0_i32 = arith.constant 0 : i32
    %c0_i32_0 = arith.constant 0 : i32
    %c0_i32_1 = arith.constant 0 : i32
    return %c0_i32, %c0_i32_0 : i32, i32
  }
  func.func @transform_5(%arg0: i32) -> (i32, i32) {
    %c0_i32 = arith.constant 0 : i32
    %c0_i32_0 = arith.constant 0 : i32
    %c0_i32_1 = arith.constant 0 : i32
    return %c0_i32, %c0_i32_0 : i32, i32
  }
  func.func @transform_6(%arg0: i32) -> (i32, i32) {
    %c0_i32 = arith.constant 0 : i32
    %c0_i32_0 = arith.constant 0 : i32
    %c0_i32_1 = arith.constant 0 : i32
    return %c0_i32, %c0_i32_0 : i32, i32
  }
  func.func @transform_7(%arg0: i32) -> (i32, i32) {
    %c0_i32 = arith.constant 0 : i32
    %c0_i32_0 = arith.constant 0 : i32
    %c0_i32_1 = arith.constant 0 : i32
    return %c0_i32, %c0_i32_0 : i32, i32
  }
  func.func @transform_8(%arg0: i32) -> (i32, i32) {
    %c0_i32 = arith.constant 0 : i32
    %c0_i32_0 = arith.constant 0 : i32
    %c0_i32_1 = arith.constant 0 : i32
    return %c0_i32, %c0_i32_0 : i32, i32
  }
  func.func @transform_9(%arg0: i32) -> (i32, i32) {
    %c0_i32 = arith.constant 0 : i32
    %c0_i32_0 = arith.constant 0 : i32
    return %arg0, %c0_i32 : i32, i32
  }
}

</mosaic_0001>

<llo_original>
// kernel: cnn_classifier_forward.1
$region0: #{cnn_classifier_forward.1}
  #allocation0 [shape = 'u32[]', space=smem, size = 0x4, offset = 0x4, fixed_abs, tag = 'smem constant byte address 0x4 - core index']
  #allocation1 [shape = 'u32[144,128]{1,0:T(1,128)}', space=vmem, size = 0x12000, scoped, tag = 'internal scratch']
  %s0 = inlined_call_operand.vmem [shape: bf16[16,128], index: 0, kind: input, shape index: {}]
  %s1 = inlined_call_operand.hbm [shape: bf16[128,128], index: 1, kind: input, shape index: {}]
  %s2 = inlined_call_operand.vmem [shape: f32[1,128], index: 2, kind: input, shape index: {}]
  %s3 = inlined_call_operand.hbm [shape: bf16[128,256], index: 3, kind: input, shape index: {}]
  %s4 = inlined_call_operand.vmem [shape: f32[1,256], index: 4, kind: input, shape index: {}]
  %s5 = inlined_call_operand.hbm [shape: bf16[256,512], index: 5, kind: input, shape index: {}]
  %s6 = inlined_call_operand.vmem [shape: f32[1,512], index: 6, kind: input, shape index: {}]
  %s7 = inlined_call_operand.hbm [shape: bf16[512,128], index: 7, kind: input, shape index: {}]
  %s8 = inlined_call_operand.vmem [shape: f32[1,128], index: 8, kind: input, shape index: {}]
  %s9 = inlined_call_operand.vmem [shape: f32[16,128], index: 9, kind: output, shape index: {}]
  %s10 = sld [smem:[#allocation0]]
  $region62: #{cnn_classifier_forward.1} parent=0
    _
  %s12 = ssub.s32 1, %s10
  %s13 = scalar_select 0, %s12, %s10
  $region1: #{cnn_classifier_forward.1} parent=0
    #allocation2 [shape = 'u8[32768]{0}', space=vmem, size = 0x8000, scoped, tag = 'input window, operand 1, single buffered']
    #allocation3 [shape = 's32[1]{0}', space=sflag, size = 0x4, scoped, tag = 'scoped memory for cnn_classifier_forward.1']
    #allocation4 [shape = 'u8[65536]{0}', space=vmem, size = 0x10000, scoped, tag = 'input window, operand 3, single buffered']
    #allocation5 [shape = 's32[1]{0}', space=sflag, size = 0x4, scoped, tag = 'scoped memory for cnn_classifier_forward.1']
    #allocation6 [shape = 'u8[262144]{0}', space=vmem, size = 0x40000, scoped, tag = 'input window, operand 5, single buffered']
    #allocation7 [shape = 'u8[131072]{0}', space=vmem, size = 0x20000, scoped, tag = 'input window, operand 7, single buffered']
    #allocation8 [shape = 's32[1]{0}', space=sflag, size = 0x4, scoped, tag = 'scoped memory for cnn_classifier_forward.1']
    %14 = vsyncpa [#allocation3], 0
    %15 = vsyncpa [#allocation5], 0
    %16 = vsyncpa [#allocation8], 0
    // Predicated region
    $region2: #{cnn_classifier_forward.1} parent=1 // pred_check
      _
    $region3: #{cnn_classifier_forward.1} parent=1 // pred_check_branch
      %18 = sbr.rel (0) target = $region5
    $region4: #{cnn_classifier_forward.1} parent=1 // pred_region
      _
    $region5: #{cnn_classifier_forward.1} parent=1 // pred_fallthru
      _
    // Predicated region
    $region6: #{cnn_classifier_forward.1} parent=1 // pred_check
      _
    $region7: #{cnn_classifier_forward.1} parent=1 // pred_check_branch
      %20 = sbr.rel (0) target = $region9
    $region8: #{cnn_classifier_forward.1} parent=1 // pred_region
      %s22 = ssub.s32 1024, 1024
      %23 = vsyncadd [#allocation3], %s22
      %s24 = sshll.u32 [#allocation2], 4
      %s25 = int_to_ptr.vmem [resolvable:$true] %s24
      %30 = dma.hbm_to_vmem [thread:$0]  %s1, 1024, %s25, [#allocation3], 64, 64, 4
    $region9: #{cnn_classifier_forward.1} parent=1 // pred_fallthru
      _
    // Predicated region
    $region10: #{cnn_classifier_forward.1} parent=1 // pred_check
      _
    $region11: #{cnn_classifier_forward.1} parent=1 // pred_check_branch
      %32 = sbr.rel (0) target = $region13
    $region12: #{cnn_classifier_forward.1} parent=1 // pred_region
      _
    $region13: #{cnn_classifier_forward.1} parent=1 // pred_fallthru
      _
    // Predicated region
    $region14: #{cnn_classifier_forward.1} parent=1 // pred_check
      _
    $region15: #{cnn_classifier_forward.1} parent=1 // pred_check_branch
      %34 = sbr.rel (0) target = $region17
    $region16: #{cnn_classifier_forward.1} parent=1 // pred_region
      %s36 = ssub.s32 2048, 2048
      %37 = vsyncadd [#allocation5], %s36
      %s38 = sshll.u32 [#allocation4], 4
      %s39 = int_to_ptr.vmem [resolvable:$true] %s38
      %44 = dma.hbm_to_vmem [thread:$0]  %s3, 2048, %s39, [#allocation5], 128, 128, 8
    $region17: #{cnn_classifier_forward.1} parent=1 // pred_fallthru
      _
    // Predicated region
    $region18: #{cnn_classifier_forward.1} parent=1 // pred_check
      _
    $region19: #{cnn_classifier_forward.1} parent=1 // pred_check_branch
      %46 = sbr.rel (0) target = $region21
    $region20: #{cnn_classifier_forward.1} parent=1 // pred_region
      _
    $region21: #{cnn_classifier_forward.1} parent=1 // pred_fallthru
      _
    // Predicated region
    $region22: #{cnn_classifier_forward.1} parent=1 // pred_check
      _
    $region23: #{cnn_classifier_forward.1} parent=1 // pred_check_branch
      %48 = sbr.rel (0) target = $region25
    $region24: #{cnn_classifier_forward.1} parent=1 // pred_region
      %s50 = ssub.s32 8192, 8192
      %51 = vsyncadd [#allocation5], %s50
      %s52 = sshll.u32 [#allocation6], 4
      %s53 = int_to_ptr.vmem [resolvable:$true] %s52
      %58 = dma.hbm_to_vmem [thread:$0]  %s5, 8192, %s53, [#allocation5], 256, 256, 16
    $region25: #{cnn_classifier_forward.1} parent=1 // pred_fallthru
      _
    // Predicated region
    $region26: #{cnn_classifier_forward.1} parent=1 // pred_check
      _
    $region27: #{cnn_classifier_forward.1} parent=1 // pred_check_branch
      %60 = sbr.rel (0) target = $region29
    $region28: #{cnn_classifier_forward.1} parent=1 // pred_region
      _
    $region29: #{cnn_classifier_forward.1} parent=1 // pred_fallthru
      _
    // Predicated region
    $region30: #{cnn_classifier_forward.1} parent=1 // pred_check
      _
    $region31: #{cnn_classifier_forward.1} parent=1 // pred_check_branch
      %62 = sbr.rel (0) target = $region33
    $region32: #{cnn_classifier_forward.1} parent=1 // pred_region
      %s64 = ssub.s32 4096, 4096
      %65 = vsyncadd [#allocation8], %s64
      %s66 = sshll.u32 [#allocation7], 4
      %s67 = int_to_ptr.vmem [resolvable:$true] %s66
      %72 = dma.hbm_to_vmem [thread:$0]  %s7, 4096, %s67, [#allocation8], 64, 64, 4
    $region33: #{cnn_classifier_forward.1} parent=1 // pred_fallthru
      _
    // Predicated region
    $region34: #{cnn_classifier_forward.1} parent=1 // pred_check
      _
    $region35: #{cnn_classifier_forward.1} parent=1 // pred_check_branch
      %74 = sbr.rel (0) target = $region37
    $region36: #{cnn_classifier_forward.1} parent=1 // pred_region
      _
    $region37: #{cnn_classifier_forward.1} parent=1 // pred_fallthru
      _
    // Predicated region
    $region38: #{cnn_classifier_forward.1} parent=1 // pred_check
      _
    $region39: #{cnn_classifier_forward.1} parent=1 // pred_check_branch
      %76 = sbr.rel (0) target = $region41
    $region40: #{cnn_classifier_forward.1} parent=1 // pred_region
      %77 = dma.done [#allocation3], 1024
    $region41: #{cnn_classifier_forward.1} parent=1 // pred_fallthru
      _
    // Predicated region
    $region42: #{cnn_classifier_forward.1} parent=1 // pred_check
      _
    $region43: #{cnn_classifier_forward.1} parent=1 // pred_check_branch
      %79 = sbr.rel (0) target = $region45
    $region44: #{cnn_classifier_forward.1} parent=1 // pred_region
      %80 = dma.done [#allocation5], 2048
    $region45: #{cnn_classifier_forward.1} parent=1 // pred_fallthru
      _
    // Predicated region
    $region46: #{cnn_classifier_forward.1} parent=1 // pred_check
      _
    $region47: #{cnn_classifier_forward.1} parent=1 // pred_check_branch
      %82 = sbr.rel (0) target = $region49
    $region48: #{cnn_classifier_forward.1} parent=1 // pred_region
      %83 = dma.done [#allocation5], 8192
    $region49: #{cnn_classifier_forward.1} parent=1 // pred_fallthru
      _
    // Predicated region
    $region50: #{cnn_classifier_forward.1} parent=1 // pred_check
      _
    $region51: #{cnn_classifier_forward.1} parent=1 // pred_check_branch
      %85 = sbr.rel (0) target = $region53
    $region52: #{cnn_classifier_forward.1} parent=1 // pred_region
      %86 = dma.done [#allocation8], 4096
    $region53: #{cnn_classifier_forward.1} parent=1 // pred_fallthru
      _
    %v88 = vld [vmem:[%s0] sm:$0xf]
    %v89 = vld [vmem:[%s0 + $0x4] sm:$0xf]
    %v90 = vld [vmem:[#allocation2] sm:$0xf]
    %v91 = vld [vmem:[#allocation2 + $0x4] sm:$0xf]
    %v92 = vld [vmem:[#allocation2 + $0x8] sm:$0xf]
    %v93 = vld [vmem:[#allocation2 + $0xc] sm:$0xf]
    %v94 = vld [vmem:[#allocation2 + $0x10] sm:$0xf]
    %v95 = vld [vmem:[#allocation2 + $0x14] sm:$0xf]
    %v96 = vld [vmem:[#allocation2 + $0x18] sm:$0xf]
    %v97 = vld [vmem:[#allocation2 + $0x1c] sm:$0xf]
    %v98 = vld [vmem:[#allocation2 + $0x20] sm:$0xf]
    %v99 = vld [vmem:[#allocation2 + $0x24] sm:$0xf]
    %v100 = vld [vmem:[#allocation2 + $0x28] sm:$0xf]
    %v101 = vld [vmem:[#allocation2 + $0x2c] sm:$0xf]
    %v102 = vld [vmem:[#allocation2 + $0x30] sm:$0xf]
    %v103 = vld [vmem:[#allocation2 + $0x34] sm:$0xf]
    %v104 = vld [vmem:[#allocation2 + $0x38] sm:$0xf]
    %v105 = vld [vmem:[#allocation2 + $0x3c] sm:$0xf]
    %v106 = vld [vmem:[%s2] sm:$0x1]
    %v108 = vlaneseq
    %v109 = vshrl.u32 %v108, 7
    %v110 = vsub.s32 0, %v109
    %v111 = vrot.slane %v106, %v110
    %v115 = vunpack.c.l.b16 %v88
    %v116 = vunpack.c.l.b16 %v89
    %v117 = vpack.c.b16 %v116, %v115
    %v135 = vunpack.c.l.b16 %v90
    %v136 = vunpack.c.l.b16 %v91
    %v137 = vunpack.c.l.b16 %v92
    %v138 = vunpack.c.l.b16 %v93
    %v139 = vunpack.c.l.b16 %v94
    %v140 = vunpack.c.l.b16 %v95
    %v141 = vunpack.c.l.b16 %v96
    %v142 = vunpack.c.l.b16 %v97
    %v143 = vunpack.c.l.b16 %v98
    %v144 = vunpack.c.l.b16 %v99
    %v145 = vunpack.c.l.b16 %v100
    %v146 = vunpack.c.l.b16 %v101
    %v147 = vunpack.c.l.b16 %v102
    %v148 = vunpack.c.l.b16 %v103
    %v149 = vunpack.c.l.b16 %v104
    %v150 = vunpack.c.l.b16 %v105
    %v151 = vpack.c.b16 %v136, %v135
    %v152 = vpack.c.b16 %v138, %v137
    %v153 = vpack.c.b16 %v140, %v139
    %v154 = vpack.c.b16 %v142, %v141
    %v155 = vpack.c.b16 %v144, %v143
    %v156 = vpack.c.b16 %v146, %v145
    %v157 = vpack.c.b16 %v148, %v147
    %v158 = vpack.c.b16 %v150, %v149
    %167 = vmatprep.subr.bf16.mxu0 0
    %168 = vmatpush1.bf16.msra.mxu0 %v158
    %169 = vmatprep.subr.bf16.mxu0 0
    %170 = vmatpush1.bf16.msra.mxu0 %v157
    %171 = vmatprep.subr.bf16.mxu0 0
    %172 = vmatpush1.bf16.msra.mxu0 %v156
    %173 = vmatprep.subr.bf16.mxu0 0
    %174 = vmatpush1.bf16.msra.mxu0 %v155
    %175 = vmatprep.subr.bf16.mxu0 0
    %176 = vmatpush1.bf16.msra.mxu0 %v154
    %177 = vmatprep.subr.bf16.mxu0 0
    %178 = vmatpush1.bf16.msra.mxu0 %v153
    %179 = vmatprep.subr.bf16.mxu0 0
    %180 = vmatpush1.bf16.msra.mxu0 %v152
    %181 = vmatprep.subr.bf16.mxu0 0
    %182 = vmatpush1.bf16.msra.mxu0 %v151
    %183 = vmatprep.subr.bf16.mxu0 0
    %184 = vmatpush2.bf16.msra.mxu0 0
    %185 = vmatprep.subr.bf16.mxu0 0
    %186 = vmatpush2.bf16.msra.mxu0 0
    %187 = vmatprep.subr.bf16.mxu0 0
    %188 = vmatpush2.bf16.msra.mxu0 0
    %189 = vmatprep.subr.bf16.mxu0 0
    %190 = vmatpush2.bf16.msra.mxu0 0
    %191 = vmatprep.subr.bf16.mxu0 0
    %192 = vmatpush2.bf16.msra.mxu0 0
    %193 = vmatprep.subr.bf16.mxu0 0
    %194 = vmatpush2.bf16.msra.mxu0 0
    %195 = vmatprep.subr.bf16.mxu0 0
    %196 = vmatpush2.bf16.msra.mxu0 0
    %197 = vmatprep.subr.bf16.mxu0 0
    %198 = vmatpush2.bf16.msra.mxu0 0
    %199 = vmatprep.mubr.bf16.mxu0 0
    %200 = vmatmul.mubr.bf16.gmra.mxu0 %v117
    %v201 = vpop.f32.mrf.mxu0
    %v202 = vadd.f32 %v111, %v201
    %v203 = vpop.f32.mrf.mxu0
    %v204 = vpop.f32.mrf.mxu0
    %v205 = vadd.f32 %v111, %v204
    %v206 = vpop.f32.mrf.mxu0
    %207 = vdwg.mxu0
    %v208 = vmax.f32 %v202, 0.0
    %v209 = vmax.f32 %v205, 0.0
    %v210 = vpack.c.bf16 %v209, %v208
    %v211 = vld [vmem:[#allocation4] sm:$0xff]
    %v212 = vld [vmem:[#allocation4 + $0x8] sm:$0xff]
    %v213 = vld [vmem:[#allocation4 + $0x10] sm:$0xff]
    %v214 = vld [vmem:[#allocation4 + $0x18] sm:$0xff]
    %v215 = vld [vmem:[#allocation4 + $0x20] sm:$0xff]
    %v216 = vld [vmem:[#allocation4 + $0x28] sm:$0xff]
    %v217 = vld [vmem:[#allocation4 + $0x30] sm:$0xff]
    %v218 = vld [vmem:[#allocation4 + $0x38] sm:$0xff]
    %v219 = vld [vmem:[#allocation4 + $0x40] sm:$0xff]
    %v220 = vld [vmem:[#allocation4 + $0x48] sm:$0xff]
    %v221 = vld [vmem:[#allocation4 + $0x50] sm:$0xff]
    %v222 = vld [vmem:[#allocation4 + $0x58] sm:$0xff]
    %v223 = vld [vmem:[#allocation4 + $0x60] sm:$0xff]
    %v224 = vld [vmem:[#allocation4 + $0x68] sm:$0xff]
    %v225 = vld [vmem:[#allocation4 + $0x70] sm:$0xff]
    %v226 = vld [vmem:[#allocation4 + $0x78] sm:$0xff]
    %v227 = vld [vmem:[%s4] sm:$0x3]
    %v229 = vlaneseq
    %v230 = vshrl.u32 %v229, 7
    %v231 = vsub.s32 0, %v230
    %v232 = vrot.slane %v227, %v231
    %v233 = vlaneseq
    %v234 = vshrl.u32 %v233, 7
    %v235 = vsub.s32 1, %v234
    %v236 = vrot.slane %v227, %v235
    %v255 = vunpack.c.l.b16 %v211
    %v256 = vunpack.c.h.b16 %v211
    %v257 = vunpack.c.l.b16 %v212
    %v258 = vunpack.c.h.b16 %v212
    %v259 = vunpack.c.l.b16 %v213
    %v260 = vunpack.c.h.b16 %v213
    %v261 = vunpack.c.l.b16 %v214
    %v262 = vunpack.c.h.b16 %v214
    %v263 = vunpack.c.l.b16 %v215
    %v264 = vunpack.c.h.b16 %v215
    %v265 = vunpack.c.l.b16 %v216
    %v266 = vunpack.c.h.b16 %v216
    %v267 = vunpack.c.l.b16 %v217
    %v268 = vunpack.c.h.b16 %v217
    %v269 = vunpack.c.l.b16 %v218
    %v270 = vunpack.c.h.b16 %v218
    %v271 = vunpack.c.l.b16 %v219
    %v272 = vunpack.c.h.b16 %v219
    %v273 = vunpack.c.l.b16 %v220
    %v274 = vunpack.c.h.b16 %v220
    %v275 = vunpack.c.l.b16 %v221
    %v276 = vunpack.c.h.b16 %v221
    %v277 = vunpack.c.l.b16 %v222
    %v278 = vunpack.c.h.b16 %v222
    %v279 = vunpack.c.l.b16 %v223
    %v280 = vunpack.c.h.b16 %v223
    %v281 = vunpack.c.l.b16 %v224
    %v282 = vunpack.c.h.b16 %v224
    %v283 = vunpack.c.l.b16 %v225
    %v284 = vunpack.c.h.b16 %v225
    %v285 = vunpack.c.l.b16 %v226
    %v286 = vunpack.c.h.b16 %v226
    %v287 = vpack.c.b16 %v257, %v255
    %v288 = vpack.c.b16 %v258, %v256
    %v289 = vpack.c.b16 %v261, %v259
    %v290 = vpack.c.b16 %v262, %v260
    %v291 = vpack.c.b16 %v265, %v263
    %v292 = vpack.c.b16 %v266, %v264
    %v293 = vpack.c.b16 %v269, %v267
    %v294 = vpack.c.b16 %v270, %v268
    %v295 = vpack.c.b16 %v273, %v271
    %v296 = vpack.c.b16 %v274, %v272
    %v297 = vpack.c.b16 %v277, %v275
    %v298 = vpack.c.b16 %v278, %v276
    %v299 = vpack.c.b16 %v281, %v279
    %v300 = vpack.c.b16 %v282, %v280
    %v301 = vpack.c.b16 %v285, %v283
    %v302 = vpack.c.b16 %v286, %v284
    %319 = vmatprep.subr.bf16.mxu0 %v302
    %320 = vmatpush1.bf16.msra.mxu0 %v301
    %321 = vmatprep.subr.bf16.mxu0 %v300
    %322 = vmatpush1.bf16.msra.mxu0 %v299
    %323 = vmatprep.subr.bf16.mxu0 %v298
    %324 = vmatpush1.bf16.msra.mxu0 %v297
    %325 = vmatprep.subr.bf16.mxu0 %v296
    %326 = vmatpush1.bf16.msra.mxu0 %v295
    %327 = vmatprep.subr.bf16.mxu0 %v294
    %328 = vmatpush1.bf16.msra.mxu0 %v293
    %329 = vmatprep.subr.bf16.mxu0 %v292
    %330 = vmatpush1.bf16.msra.mxu0 %v291
    %331 = vmatprep.subr.bf16.mxu0 %v290
    %332 = vmatpush1.bf16.msra.mxu0 %v289
    %333 = vmatprep.subr.bf16.mxu0 %v288
    %334 = vmatpush1.bf16.msra.mxu0 %v287
    %335 = vmatprep.subr.bf16.mxu0 0
    %336 = vmatpush2.bf16.msra.mxu0 0
    %337 = vmatprep.subr.bf16.mxu0 0
    %338 = vmatpush2.bf16.msra.mxu0 0
    %339 = vmatprep.subr.bf16.mxu0 0
    %340 = vmatpush2.bf16.msra.mxu0 0
    %341 = vmatprep.subr.bf16.mxu0 0
    %342 = vmatpush2.bf16.msra.mxu0 0
    %343 = vmatprep.subr.bf16.mxu0 0
    %344 = vmatpush2.bf16.msra.mxu0 0
    %345 = vmatprep.subr.bf16.mxu0 0
    %346 = vmatpush2.bf16.msra.mxu0 0
    %347 = vmatprep.subr.bf16.mxu0 0
    %348 = vmatpush2.bf16.msra.mxu0 0
    %349 = vmatprep.subr.bf16.mxu0 0
    %350 = vmatpush2.bf16.msra.mxu0 0
    %351 = vmatprep.mubr.bf16.mxu0 0
    %352 = vmatmul.mubr.bf16.gmra.mxu0 %v210
    %v353 = vpop.f32.mrf.mxu0
    %v354 = vadd.f32 %v232, %v353
    %v355 = vpop.f32.mrf.mxu0
    %v356 = vadd.f32 %v236, %v355
    %v357 = vpop.f32.mrf.mxu0
    %v358 = vadd.f32 %v232, %v357
    %v359 = vpop.f32.mrf.mxu0
    %v360 = vadd.f32 %v236, %v359
    %361 = vdwg.mxu0
    %v362 = vmax.f32 %v354, 0.0
    %v363 = vmax.f32 %v356, 0.0
    %v364 = vmax.f32 %v358, 0.0
    %v365 = vmax.f32 %v360, 0.0
    %v366 = vpack.c.bf16 %v364, %v362
    %v367 = vpack.c.bf16 %v365, %v363
    %v368 = vld [vmem:[#allocation6] sm:$0xff]
    %v369 = vld [vmem:[#allocation6 + $0x8] sm:$0xff]
    %v370 = vld [vmem:[#allocation6 + $0x10] sm:$0xff]
    %v371 = vld [vmem:[#allocation6 + $0x18] sm:$0xff]
    %v372 = vld [vmem:[#allocation6 + $0x20] sm:$0xff]
    %v373 = vld [vmem:[#allocation6 + $0x28] sm:$0xff]
    %v374 = vld [vmem:[#allocation6 + $0x30] sm:$0xff]
    %v375 = vld [vmem:[#allocation6 + $0x38] sm:$0xff]
    %v376 = vld [vmem:[#allocation6 + $0x40] sm:$0xff]
    %v377 = vld [vmem:[#allocation6 + $0x48] sm:$0xff]
    %v378 = vld [vmem:[#allocation6 + $0x50] sm:$0xff]
    %v379 = vld [vmem:[#allocation6 + $0x58] sm:$0xff]
    %v380 = vld [vmem:[#allocation6 + $0x60] sm:$0xff]
    %v381 = vld [vmem:[#allocation6 + $0x68] sm:$0xff]
    %v382 = vld [vmem:[#allocation6 + $0x70] sm:$0xff]
    %v383 = vld [vmem:[#allocation6 + $0x78] sm:$0xff]
    %v384 = vld [vmem:[#allocation6 + $0x80] sm:$0xff]
    %v385 = vld [vmem:[#allocation6 + $0x88] sm:$0xff]
    %v386 = vld [vmem:[#allocation6 + $0x90] sm:$0xff]
    %v387 = vld [vmem:[#allocation6 + $0x98] sm:$0xff]
    %v388 = vld [vmem:[#allocation6 + $0xa0] sm:$0xff]
    %v389 = vld [vmem:[#allocation6 + $0xa8] sm:$0xff]
    %v390 = vld [vmem:[#allocation6 + $0xb0] sm:$0xff]
    %v391 = vld [vmem:[#allocation6 + $0xb8] sm:$0xff]
    %v392 = vld [vmem:[#allocation6 + $0xc0] sm:$0xff]
    %v393 = vld [vmem:[#allocation6 + $0xc8] sm:$0xff]
    %v394 = vld [vmem:[#allocation6 + $0xd0] sm:$0xff]
    %v395 = vld [vmem:[#allocation6 + $0xd8] sm:$0xff]
    %v396 = vld [vmem:[#allocation6 + $0xe0] sm:$0xff]
    %v397 = vld [vmem:[#allocation6 + $0xe8] sm:$0xff]
    %v398 = vld [vmem:[#allocation6 + $0xf0] sm:$0xff]
    %v399 = vld [vmem:[#allocation6 + $0xf8] sm:$0xff]
    %v400 = vld [vmem:[#allocation6 + $0x100] sm:$0xff]
    %v401 = vld [vmem:[#allocation6 + $0x108] sm:$0xff]
    %v402 = vld [vmem:[#allocation6 + $0x110] sm:$0xff]
    %v403 = vld [vmem:[#allocation6 + $0x118] sm:$0xff]
    %v404 = vld [vmem:[#allocation6 + $0x120] sm:$0xff]
    %v405 = vld [vmem:[#allocation6 + $0x128] sm:$0xff]
    %v406 = vld [vmem:[#allocation6 + $0x130] sm:$0xff]
    %v407 = vld [vmem:[#allocation6 + $0x138] sm:$0xff]
    %v408 = vld [vmem:[#allocation6 + $0x140] sm:$0xff]
    %v409 = vld [vmem:[#allocation6 + $0x148] sm:$0xff]
    %v410 = vld [vmem:[#allocation6 + $0x150] sm:$0xff]
    %v411 = vld [vmem:[#allocation6 + $0x158] sm:$0xff]
    %v412 = vld [vmem:[#allocation6 + $0x160] sm:$0xff]
    %v413 = vld [vmem:[#allocation6 + $0x168] sm:$0xff]
    %v414 = vld [vmem:[#allocation6 + $0x170] sm:$0xff]
    %v415 = vld [vmem:[#allocation6 + $0x178] sm:$0xff]
    %v416 = vld [vmem:[#allocation6 + $0x180] sm:$0xff]
    %v417 = vld [vmem:[#allocation6 + $0x188] sm:$0xff]
    %v418 = vld [vmem:[#allocation6 + $0x190] sm:$0xff]
    %v419 = vld [vmem:[#allocation6 + $0x198] sm:$0xff]
    %v420 = vld [vmem:[#allocation6 + $0x1a0] sm:$0xff]
    %v421 = vld [vmem:[#allocation6 + $0x1a8] sm:$0xff]
    %v422 = vld [vmem:[#allocation6 + $0x1b0] sm:$0xff]
    %v423 = vld [vmem:[#allocation6 + $0x1b8] sm:$0xff]
    %v424 = vld [vmem:[#allocation6 + $0x1c0] sm:$0xff]
    %v425 = vld [vmem:[#allocation6 + $0x1c8] sm:$0xff]
    %v426 = vld [vmem:[#allocation6 + $0x1d0] sm:$0xff]
    %v427 = vld [vmem:[#allocation6 + $0x1d8] sm:$0xff]
    %v428 = vld [vmem:[#allocation6 + $0x1e0] sm:$0xff]
    %v429 = vld [vmem:[#allocation6 + $0x1e8] sm:$0xff]
    %v430 = vld [vmem:[#allocation6 + $0x1f0] sm:$0xff]
    %v431 = vld [vmem:[#allocation6 + $0x1f8] sm:$0xff]
    %v432 = vld [vmem:[%s6] sm:$0xf]
    %v434 = vlaneseq
    %v435 = vshrl.u32 %v434, 7
    %v436 = vsub.s32 0, %v435
    %v437 = vrot.slane %v432, %v436
    %v438 = vlaneseq
    %v439 = vshrl.u32 %v438, 7
    %v440 = vsub.s32 1, %v439
    %v441 = vrot.slane %v432, %v440
    %v442 = vlaneseq
    %v443 = vshrl.u32 %v442, 7
    %v444 = vsub.s32 2, %v443
    %v445 = vrot.slane %v432, %v444
    %v446 = vlaneseq
    %v447 = vshrl.u32 %v446, 7
    %v448 = vsub.s32 3, %v447
    %v449 = vrot.slane %v432, %v448
    %v518 = vunpack.c.l.b16 %v368
    %v519 = vunpack.c.h.b16 %v368
    %v520 = vunpack.c.l.b16 %v369
    %v521 = vunpack.c.h.b16 %v369
    %v522 = vunpack.c.l.b16 %v370
    %v523 = vunpack.c.h.b16 %v370
    %v524 = vunpack.c.l.b16 %v371
    %v525 = vunpack.c.h.b16 %v371
    %v526 = vunpack.c.l.b16 %v372
    %v527 = vunpack.c.h.b16 %v372
    %v528 = vunpack.c.l.b16 %v373
    %v529 = vunpack.c.h.b16 %v373
    %v530 = vunpack.c.l.b16 %v374
    %v531 = vunpack.c.h.b16 %v374
    %v532 = vunpack.c.l.b16 %v375
    %v533 = vunpack.c.h.b16 %v375
    %v534 = vunpack.c.l.b16 %v376
    %v535 = vunpack.c.h.b16 %v376
    %v536 = vunpack.c.l.b16 %v377
    %v537 = vunpack.c.h.b16 %v377
    %v538 = vunpack.c.l.b16 %v378
    %v539 = vunpack.c.h.b16 %v378
    %v540 = vunpack.c.l.b16 %v379
    %v541 = vunpack.c.h.b16 %v379
    %v542 = vunpack.c.l.b16 %v380
    %v543 = vunpack.c.h.b16 %v380
    %v544 = vunpack.c.l.b16 %v381
    %v545 = vunpack.c.h.b16 %v381
    %v546 = vunpack.c.l.b16 %v382
    %v547 = vunpack.c.h.b16 %v382
    %v548 = vunpack.c.l.b16 %v383
    %v549 = vunpack.c.h.b16 %v383
    %v550 = vunpack.c.l.b16 %v384
    %v551 = vunpack.c.h.b16 %v384
    %v552 = vunpack.c.l.b16 %v385
    %v553 = vunpack.c.h.b16 %v385
    %v554 = vunpack.c.l.b16 %v386
    %v555 = vunpack.c.h.b16 %v386
    %v556 = vunpack.c.l.b16 %v387
    %v557 = vunpack.c.h.b16 %v387
    %v558 = vunpack.c.l.b16 %v388
    %v559 = vunpack.c.h.b16 %v388
    %v560 = vunpack.c.l.b16 %v389
    %v561 = vunpack.c.h.b16 %v389
    %v562 = vunpack.c.l.b16 %v390
    %v563 = vunpack.c.h.b16 %v390
    %v564 = vunpack.c.l.b16 %v391
    %v565 = vunpack.c.h.b16 %v391
    %v566 = vunpack.c.l.b16 %v392
    %v567 = vunpack.c.h.b16 %v392
    %v568 = vunpack.c.l.b16 %v393
    %v569 = vunpack.c.h.b16 %v393
    %v570 = vunpack.c.l.b16 %v394
    %v571 = vunpack.c.h.b16 %v394
    %v572 = vunpack.c.l.b16 %v395
    %v573 = vunpack.c.h.b16 %v395
    %v574 = vunpack.c.l.b16 %v396
    %v575 = vunpack.c.h.b16 %v396
    %v576 = vunpack.c.l.b16 %v397
    %v577 = vunpack.c.h.b16 %v397
    %v578 = vunpack.c.l.b16 %v398
    %v579 = vunpack.c.h.b16 %v398
    %v580 = vunpack.c.l.b16 %v399
    %v581 = vunpack.c.h.b16 %v399
    %v582 = vunpack.c.l.b16 %v400
    %v583 = vunpack.c.h.b16 %v400
    %v584 = vunpack.c.l.b16 %v401
    %v585 = vunpack.c.h.b16 %v401
    %v586 = vunpack.c.l.b16 %v402
    %v587 = vunpack.c.h.b16 %v402
    %v588 = vunpack.c.l.b16 %v403
    %v589 = vunpack.c.h.b16 %v403
    %v590 = vunpack.c.l.b16 %v404
    %v591 = vunpack.c.h.b16 %v404
    %v592 = vunpack.c.l.b16 %v405
    %v593 = vunpack.c.h.b16 %v405
    %v594 = vunpack.c.l.b16 %v406
    %v595 = vunpack.c.h.b16 %v406
    %v596 = vunpack.c.l.b16 %v407
    %v597 = vunpack.c.h.b16 %v407
    %v598 = vunpack.c.l.b16 %v408
    %v599 = vunpack.c.h.b16 %v408
    %v600 = vunpack.c.l.b16 %v409
    %v601 = vunpack.c.h.b16 %v409
    %v602 = vunpack.c.l.b16 %v410
    %v603 = vunpack.c.h.b16 %v410
    %v604 = vunpack.c.l.b16 %v411
    %v605 = vunpack.c.h.b16 %v411
    %v606 = vunpack.c.l.b16 %v412
    %v607 = vunpack.c.h.b16 %v412
    %v608 = vunpack.c.l.b16 %v413
    %v609 = vunpack.c.h.b16 %v413
    %v610 = vunpack.c.l.b16 %v414
    %v611 = vunpack.c.h.b16 %v414
    %v612 = vunpack.c.l.b16 %v415
    %v613 = vunpack.c.h.b16 %v415
    %v614 = vunpack.c.l.b16 %v416
    %v615 = vunpack.c.h.b16 %v416
    %v616 = vunpack.c.l.b16 %v417
    %v617 = vunpack.c.h.b16 %v417
    %v618 = vunpack.c.l.b16 %v418
    %v619 = vunpack.c.h.b16 %v418
    %v620 = vunpack.c.l.b16 %v419
    %v621 = vunpack.c.h.b16 %v419
    %v622 = vunpack.c.l.b16 %v420
    %v623 = vunpack.c.h.b16 %v420
    %v624 = vunpack.c.l.b16 %v421
    %v625 = vunpack.c.h.b16 %v421
    %v626 = vunpack.c.l.b16 %v422
    %v627 = vunpack.c.h.b16 %v422
    %v628 = vunpack.c.l.b16 %v423
    %v629 = vunpack.c.h.b16 %v423
    %v630 = vunpack.c.l.b16 %v424
    %v631 = vunpack.c.h.b16 %v424
    %v632 = vunpack.c.l.b16 %v425
    %v633 = vunpack.c.h.b16 %v425
    %v634 = vunpack.c.l.b16 %v426
    %v635 = vunpack.c.h.b16 %v426
    %v636 = vunpack.c.l.b16 %v427
    %v637 = vunpack.c.h.b16 %v427
    %v638 = vunpack.c.l.b16 %v428
    %v639 = vunpack.c.h.b16 %v428
    %v640 = vunpack.c.l.b16 %v429
    %v641 = vunpack.c.h.b16 %v429
    %v642 = vunpack.c.l.b16 %v430
    %v643 = vunpack.c.h.b16 %v430
    %v644 = vunpack.c.l.b16 %v431
    %v645 = vunpack.c.h.b16 %v431
    %v646 = vpack.c.b16 %v522, %v518
    %v647 = vpack.c.b16 %v523, %v519
    %v648 = vpack.c.b16 %v524, %v520
    %v649 = vpack.c.b16 %v525, %v521
    %v650 = vpack.c.b16 %v530, %v526
    %v651 = vpack.c.b16 %v531, %v527
    %v652 = vpack.c.b16 %v532, %v528
    %v653 = vpack.c.b16 %v533, %v529
    %v654 = vpack.c.b16 %v538, %v534
    %v655 = vpack.c.b16 %v539, %v535
    %v656 = vpack.c.b16 %v540, %v536
    %v657 = vpack.c.b16 %v541, %v537
    %v658 = vpack.c.b16 %v546, %v542
    %v659 = vpack.c.b16 %v547, %v543
    %v660 = vpack.c.b16 %v548, %v544
    %v661 = vpack.c.b16 %v549, %v545
    %v662 = vpack.c.b16 %v554, %v550
    %v663 = vpack.c.b16 %v555, %v551
    %v664 = vpack.c.b16 %v556, %v552
    %v665 = vpack.c.b16 %v557, %v553
    %v666 = vpack.c.b16 %v562, %v558
    %v667 = vpack.c.b16 %v563, %v559
    %v668 = vpack.c.b16 %v564, %v560
    %v669 = vpack.c.b16 %v565, %v561
    %v670 = vpack.c.b16 %v570, %v566
    %v671 = vpack.c.b16 %v571, %v567
    %v672 = vpack.c.b16 %v572, %v568
    %v673 = vpack.c.b16 %v573, %v569
    %v674 = vpack.c.b16 %v578, %v574
    %v675 = vpack.c.b16 %v579, %v575
    %v676 = vpack.c.b16 %v580, %v576
    %v677 = vpack.c.b16 %v581, %v577
    %v678 = vpack.c.b16 %v586, %v582
    %v679 = vpack.c.b16 %v587, %v583
    %v680 = vpack.c.b16 %v588, %v584
    %v681 = vpack.c.b16 %v589, %v585
    %v682 = vpack.c.b16 %v594, %v590
    %v683 = vpack.c.b16 %v595, %v591
    %v684 = vpack.c.b16 %v596, %v592
    %v685 = vpack.c.b16 %v597, %v593
    %v686 = vpack.c.b16 %v602, %v598
    %v687 = vpack.c.b16 %v603, %v599
    %v688 = vpack.c.b16 %v604, %v600
    %v689 = vpack.c.b16 %v605, %v601
    %v690 = vpack.c.b16 %v610, %v606
    %v691 = vpack.c.b16 %v611, %v607
    %v692 = vpack.c.b16 %v612, %v608
    %v693 = vpack.c.b16 %v613, %v609
    %v694 = vpack.c.b16 %v618, %v614
    %v695 = vpack.c.b16 %v619, %v615
    %v696 = vpack.c.b16 %v620, %v616
    %v697 = vpack.c.b16 %v621, %v617
    %v698 = vpack.c.b16 %v626, %v622
    %v699 = vpack.c.b16 %v627, %v623
    %v700 = vpack.c.b16 %v628, %v624
    %v701 = vpack.c.b16 %v629, %v625
    %v702 = vpack.c.b16 %v634, %v630
    %v703 = vpack.c.b16 %v635, %v631
    %v704 = vpack.c.b16 %v636, %v632
    %v705 = vpack.c.b16 %v637, %v633
    %v706 = vpack.c.b16 %v642, %v638
    %v707 = vpack.c.b16 %v643, %v639
    %v708 = vpack.c.b16 %v644, %v640
    %v709 = vpack.c.b16 %v645, %v641
    %774 = vmatprep.subr.bf16.mxu0 %v675
    %775 = vmatpush1.bf16.msra.mxu0 %v674
    %776 = vmatprep.subr.bf16.mxu0 %v671
    %777 = vmatpush1.bf16.msra.mxu0 %v670
    %778 = vmatprep.subr.bf16.mxu0 %v667
    %779 = vmatpush1.bf16.msra.mxu0 %v666
    %780 = vmatprep.subr.bf16.mxu0 %v663
    %781 = vmatpush1.bf16.msra.mxu0 %v662
    %782 = vmatprep.subr.bf16.mxu0 %v659
    %783 = vmatpush1.bf16.msra.mxu0 %v658
    %784 = vmatprep.subr.bf16.mxu0 %v655
    %785 = vmatpush1.bf16.msra.mxu0 %v654
    %786 = vmatprep.subr.bf16.mxu0 %v651
    %787 = vmatpush1.bf16.msra.mxu0 %v650
    %788 = vmatprep.subr.bf16.mxu0 %v647
    %789 = vmatpush1.bf16.msra.mxu0 %v646
    %790 = vmatprep.subr.bf16.mxu0 %v707
    %791 = vmatpush2.bf16.msra.mxu0 %v706
    %792 = vmatprep.subr.bf16.mxu0 %v703
    %793 = vmatpush2.bf16.msra.mxu0 %v702
    %794 = vmatprep.subr.bf16.mxu0 %v699
    %795 = vmatpush2.bf16.msra.mxu0 %v698
    %796 = vmatprep.subr.bf16.mxu0 %v695
    %797 = vmatpush2.bf16.msra.mxu0 %v694
    %798 = vmatprep.subr.bf16.mxu0 %v691
    %799 = vmatpush2.bf16.msra.mxu0 %v690
    %800 = vmatprep.subr.bf16.mxu0 %v687
    %801 = vmatpush2.bf16.msra.mxu0 %v686
    %802 = vmatprep.subr.bf16.mxu0 %v683
    %803 = vmatpush2.bf16.msra.mxu0 %v682
    %804 = vmatprep.subr.bf16.mxu0 %v679
    %805 = vmatpush2.bf16.msra.mxu0 %v678
    %806 = vmatprep.mubr.bf16.mxu0 %v367
    %807 = vmatmul.mubr.bf16.gmra.mxu0 %v366
    %v808 = vpop.f32.mrf.mxu0
    %v809 = vadd.f32 %v437, %v808
    %v810 = vpop.f32.mrf.mxu0
    %v811 = vadd.f32 %v441, %v810
    %v812 = vpop.f32.mrf.mxu0
    %v813 = vadd.f32 %v437, %v812
    %v814 = vpop.f32.mrf.mxu0
    %v815 = vadd.f32 %v441, %v814
    %816 = vdwg.mxu0
    %817 = vmatprep.subr.bf16.mxu0 %v677
    %818 = vmatpush1.bf16.msra.mxu0 %v676
    %819 = vmatprep.subr.bf16.mxu0 %v673
    %820 = vmatpush1.bf16.msra.mxu0 %v672
    %821 = vmatprep.subr.bf16.mxu0 %v669
    %822 = vmatpush1.bf16.msra.mxu0 %v668
    %823 = vmatprep.subr.bf16.mxu0 %v665
    %824 = vmatpush1.bf16.msra.mxu0 %v664
    %825 = vmatprep.subr.bf16.mxu0 %v661
    %826 = vmatpush1.bf16.msra.mxu0 %v660
    %827 = vmatprep.subr.bf16.mxu0 %v657
    %828 = vmatpush1.bf16.msra.mxu0 %v656
    %829 = vmatprep.subr.bf16.mxu0 %v653
    %830 = vmatpush1.bf16.msra.mxu0 %v652
    %831 = vmatprep.subr.bf16.mxu0 %v649
    %832 = vmatpush1.bf16.msra.mxu0 %v648
    %833 = vmatprep.subr.bf16.mxu0 %v709
    %834 = vmatpush2.bf16.msra.mxu0 %v708
    %835 = vmatprep.subr.bf16.mxu0 %v705
    %836 = vmatpush2.bf16.msra.mxu0 %v704
    %837 = vmatprep.subr.bf16.mxu0 %v701
    %838 = vmatpush2.bf16.msra.mxu0 %v700
    %839 = vmatprep.subr.bf16.mxu0 %v697
    %840 = vmatpush2.bf16.msra.mxu0 %v696
    %841 = vmatprep.subr.bf16.mxu0 %v693
    %842 = vmatpush2.bf16.msra.mxu0 %v692
    %843 = vmatprep.subr.bf16.mxu0 %v689
    %844 = vmatpush2.bf16.msra.mxu0 %v688
    %845 = vmatprep.subr.bf16.mxu0 %v685
    %846 = vmatpush2.bf16.msra.mxu0 %v684
    %847 = vmatprep.subr.bf16.mxu0 %v681
    %848 = vmatpush2.bf16.msra.mxu0 %v680
    %849 = vmatprep.mubr.bf16.mxu0 %v367
    %850 = vmatmul.mubr.bf16.gmra.mxu0 %v366
    %v851 = vpop.f32.mrf.mxu0
    %v852 = vadd.f32 %v445, %v851
    %v853 = vpop.f32.mrf.mxu0
    %v854 = vadd.f32 %v449, %v853
    %v855 = vpop.f32.mrf.mxu0
    %v856 = vadd.f32 %v445, %v855
    %v857 = vpop.f32.mrf.mxu0
    %v858 = vadd.f32 %v449, %v857
    %859 = vdwg.mxu0
    %v860 = vmax.f32 %v809, 0.0
    %v861 = vmax.f32 %v811, 0.0
    %v862 = vmax.f32 %v852, 0.0
    %v863 = vmax.f32 %v854, 0.0
    %v864 = vmax.f32 %v813, 0.0
    %v865 = vmax.f32 %v815, 0.0
    %v866 = vmax.f32 %v856, 0.0
    %v867 = vmax.f32 %v858, 0.0
    %v868 = vpack.c.bf16 %v864, %v860
    %v869 = vpack.c.bf16 %v865, %v861
    %v870 = vpack.c.bf16 %v866, %v862
    %v871 = vpack.c.bf16 %v867, %v863
    %v872 = vld [vmem:[#allocation7] sm:$0xf]
    %v873 = vld [vmem:[#allocation7 + $0x4] sm:$0xf]
    %v874 = vld [vmem:[#allocation7 + $0x8] sm:$0xf]
    %v875 = vld [vmem:[#allocation7 + $0xc] sm:$0xf]
    %v876 = vld [vmem:[#allocation7 + $0x10] sm:$0xf]
    %v877 = vld [vmem:[#allocation7 + $0x14] sm:$0xf]
    %v878 = vld [vmem:[#allocation7 + $0x18] sm:$0xf]
    %v879 = vld [vmem:[#allocation7 + $0x1c] sm:$0xf]
    %v880 = vld [vmem:[#allocation7 + $0x20] sm:$0xf]
    %v881 = vld [vmem:[#allocation7 + $0x24] sm:$0xf]
    %v882 = vld [vmem:[#allocation7 + $0x28] sm:$0xf]
    %v883 = vld [vmem:[#allocation7 + $0x2c] sm:$0xf]
    %v884 = vld [vmem:[#allocation7 + $0x30] sm:$0xf]
    %v885 = vld [vmem:[#allocation7 + $0x34] sm:$0xf]
    %v886 = vld [vmem:[#allocation7 + $0x38] sm:$0xf]
    %v887 = vld [vmem:[#allocation7 + $0x3c] sm:$0xf]
    %v888 = vld [vmem:[#allocation7 + $0x40] sm:$0xf]
    %v889 = vld [vmem:[#allocation7 + $0x44] sm:$0xf]
    %v890 = vld [vmem:[#allocation7 + $0x48] sm:$0xf]
    %v891 = vld [vmem:[#allocation7 + $0x4c] sm:$0xf]
    %v892 = vld [vmem:[#allocation7 + $0x50] sm:$0xf]
    %v893 = vld [vmem:[#allocation7 + $0x54] sm:$0xf]
    %v894 = vld [vmem:[#allocation7 + $0x58] sm:$0xf]
    %v895 = vld [vmem:[#allocation7 + $0x5c] sm:$0xf]
    %v896 = vld [vmem:[#allocation7 + $0x60] sm:$0xf]
    %v897 = vld [vmem:[#allocation7 + $0x64] sm:$0xf]
    %v898 = vld [vmem:[#allocation7 + $0x68] sm:$0xf]
    %v899 = vld [vmem:[#allocation7 + $0x6c] sm:$0xf]
    %v900 = vld [vmem:[#allocation7 + $0x70] sm:$0xf]
    %v901 = vld [vmem:[#allocation7 + $0x74] sm:$0xf]
    %v902 = vld [vmem:[#allocation7 + $0x78] sm:$0xf]
    %v903 = vld [vmem:[#allocation7 + $0x7c] sm:$0xf]
    %v904 = vld [vmem:[#allocation7 + $0x80] sm:$0xf]
    %v905 = vld [vmem:[#allocation7 + $0x84] sm:$0xf]
    %v906 = vld [vmem:[#allocation7 + $0x88] sm:$0xf]
    %v907 = vld [vmem:[#allocation7 + $0x8c] sm:$0xf]
    %v908 = vld [vmem:[#allocation7 + $0x90] sm:$0xf]
    %v909 = vld [vmem:[#allocation7 + $0x94] sm:$0xf]
    %v910 = vld [vmem:[#allocation7 + $0x98] sm:$0xf]
    %v911 = vld [vmem:[#allocation7 + $0x9c] sm:$0xf]
    %v912 = vld [vmem:[#allocation7 + $0xa0] sm:$0xf]
    %v913 = vld [vmem:[#allocation7 + $0xa4] sm:$0xf]
    %v914 = vld [vmem:[#allocation7 + $0xa8] sm:$0xf]
    %v915 = vld [vmem:[#allocation7 + $0xac] sm:$0xf]
    %v916 = vld [vmem:[#allocation7 + $0xb0] sm:$0xf]
    %v917 = vld [vmem:[#allocation7 + $0xb4] sm:$0xf]
    %v918 = vld [vmem:[#allocation7 + $0xb8] sm:$0xf]
    %v919 = vld [vmem:[#allocation7 + $0xbc] sm:$0xf]
    %v920 = vld [vmem:[#allocation7 + $0xc0] sm:$0xf]
    %v921 = vld [vmem:[#allocation7 + $0xc4] sm:$0xf]
    %v922 = vld [vmem:[#allocation7 + $0xc8] sm:$0xf]
    %v923 = vld [vmem:[#allocation7 + $0xcc] sm:$0xf]
    %v924 = vld [vmem:[#allocation7 + $0xd0] sm:$0xf]
    %v925 = vld [vmem:[#allocation7 + $0xd4] sm:$0xf]
    %v926 = vld [vmem:[#allocation7 + $0xd8] sm:$0xf]
    %v927 = vld [vmem:[#allocation7 + $0xdc] sm:$0xf]
    %v928 = vld [vmem:[#allocation7 + $0xe0] sm:$0xf]
    %v929 = vld [vmem:[#allocation7 + $0xe4] sm:$0xf]
    %v930 = vld [vmem:[#allocation7 + $0xe8] sm:$0xf]
    %v931 = vld [vmem:[#allocation7 + $0xec] sm:$0xf]
    %v932 = vld [vmem:[#allocation7 + $0xf0] sm:$0xf]
    %v933 = vld [vmem:[#allocation7 + $0xf4] sm:$0xf]
    %v934 = vld [vmem:[#allocation7 + $0xf8] sm:$0xf]
    %v935 = vld [vmem:[#allocation7 + $0xfc] sm:$0xf]
    %v936 = vld [vmem:[%s8] sm:$0x1]
    %v938 = vlaneseq
    %v939 = vshrl.u32 %v938, 7
    %v940 = vsub.s32 0, %v939
    %v941 = vrot.slane %v936, %v940
    %v1007 = vunpack.c.l.b16 %v872
    %v1008 = vunpack.c.l.b16 %v873
    %v1009 = vunpack.c.l.b16 %v874
    %v1010 = vunpack.c.l.b16 %v875
    %v1011 = vunpack.c.l.b16 %v876
    %v1012 = vunpack.c.l.b16 %v877
    %v1013 = vunpack.c.l.b16 %v878
    %v1014 = vunpack.c.l.b16 %v879
    %v1015 = vunpack.c.l.b16 %v880
    %v1016 = vunpack.c.l.b16 %v881
    %v1017 = vunpack.c.l.b16 %v882
    %v1018 = vunpack.c.l.b16 %v883
    %v1019 = vunpack.c.l.b16 %v884
    %v1020 = vunpack.c.l.b16 %v885
    %v1021 = vunpack.c.l.b16 %v886
    %v1022 = vunpack.c.l.b16 %v887
    %v1023 = vunpack.c.l.b16 %v888
    %v1024 = vunpack.c.l.b16 %v889
    %v1025 = vunpack.c.l.b16 %v890
    %v1026 = vunpack.c.l.b16 %v891
    %v1027 = vunpack.c.l.b16 %v892
    %v1028 = vunpack.c.l.b16 %v893
    %v1029 = vunpack.c.l.b16 %v894
    %v1030 = vunpack.c.l.b16 %v895
    %v1031 = vunpack.c.l.b16 %v896
    %v1032 = vunpack.c.l.b16 %v897
    %v1033 = vunpack.c.l.b16 %v898
    %v1034 = vunpack.c.l.b16 %v899
    %v1035 = vunpack.c.l.b16 %v900
    %v1036 = vunpack.c.l.b16 %v901
    %v1037 = vunpack.c.l.b16 %v902
    %v1038 = vunpack.c.l.b16 %v903
    %v1039 = vunpack.c.l.b16 %v904
    %v1040 = vunpack.c.l.b16 %v905
    %v1041 = vunpack.c.l.b16 %v906
    %v1042 = vunpack.c.l.b16 %v907
    %v1043 = vunpack.c.l.b16 %v908
    %v1044 = vunpack.c.l.b16 %v909
    %v1045 = vunpack.c.l.b16 %v910
    %v1046 = vunpack.c.l.b16 %v911
    %v1047 = vunpack.c.l.b16 %v912
    %v1048 = vunpack.c.l.b16 %v913
    %v1049 = vunpack.c.l.b16 %v914
    %v1050 = vunpack.c.l.b16 %v915
    %v1051 = vunpack.c.l.b16 %v916
    %v1052 = vunpack.c.l.b16 %v917
    %v1053 = vunpack.c.l.b16 %v918
    %v1054 = vunpack.c.l.b16 %v919
    %v1055 = vunpack.c.l.b16 %v920
    %v1056 = vunpack.c.l.b16 %v921
    %v1057 = vunpack.c.l.b16 %v922
    %v1058 = vunpack.c.l.b16 %v923
    %v1059 = vunpack.c.l.b16 %v924
    %v1060 = vunpack.c.l.b16 %v925
    %v1061 = vunpack.c.l.b16 %v926
    %v1062 = vunpack.c.l.b16 %v927
    %v1063 = vunpack.c.l.b16 %v928
    %v1064 = vunpack.c.l.b16 %v929
    %v1065 = vunpack.c.l.b16 %v930
    %v1066 = vunpack.c.l.b16 %v931
    %v1067 = vunpack.c.l.b16 %v932
    %v1068 = vunpack.c.l.b16 %v933
    %v1069 = vunpack.c.l.b16 %v934
    %v1070 = vunpack.c.l.b16 %v935
    %v1071 = vpack.c.b16 %v1008, %v1007
    %v1072 = vpack.c.b16 %v1010, %v1009
    %v1073 = vpack.c.b16 %v1012, %v1011
    %v1074 = vpack.c.b16 %v1014, %v1013
    %v1075 = vpack.c.b16 %v1016, %v1015
    %v1076 = vpack.c.b16 %v1018, %v1017
    %v1077 = vpack.c.b16 %v1020, %v1019
    %v1078 = vpack.c.b16 %v1022, %v1021
    %v1079 = vpack.c.b16 %v1024, %v1023
    %v1080 = vpack.c.b16 %v1026, %v1025
    %v1081 = vpack.c.b16 %v1028, %v1027
    %v1082 = vpack.c.b16 %v1030, %v1029
    %v1083 = vpack.c.b16 %v1032, %v1031
    %v1084 = vpack.c.b16 %v1034, %v1033
    %v1085 = vpack.c.b16 %v1036, %v1035
    %v1086 = vpack.c.b16 %v1038, %v1037
    %v1087 = vpack.c.b16 %v1040, %v1039
    %v1088 = vpack.c.b16 %v1042, %v1041
    %v1089 = vpack.c.b16 %v1044, %v1043
    %v1090 = vpack.c.b16 %v1046, %v1045
    %v1091 = vpack.c.b16 %v1048, %v1047
    %v1092 = vpack.c.b16 %v1050, %v1049
    %v1093 = vpack.c.b16 %v1052, %v1051
    %v1094 = vpack.c.b16 %v1054, %v1053
    %v1095 = vpack.c.b16 %v1056, %v1055
    %v1096 = vpack.c.b16 %v1058, %v1057
    %v1097 = vpack.c.b16 %v1060, %v1059
    %v1098 = vpack.c.b16 %v1062, %v1061
    %v1099 = vpack.c.b16 %v1064, %v1063
    %v1100 = vpack.c.b16 %v1066, %v1065
    %v1101 = vpack.c.b16 %v1068, %v1067
    %v1102 = vpack.c.b16 %v1070, %v1069
    %1135 = vmatprep.subr.bf16.mxu0 0
    %1136 = vmatpush1.bf16.msra.mxu0 %v1078
    %1137 = vmatprep.subr.bf16.mxu0 0
    %1138 = vmatpush1.bf16.msra.mxu0 %v1077
    %1139 = vmatprep.subr.bf16.mxu0 0
    %1140 = vmatpush1.bf16.msra.mxu0 %v1076
    %1141 = vmatprep.subr.bf16.mxu0 0
    %1142 = vmatpush1.bf16.msra.mxu0 %v1075
    %1143 = vmatprep.subr.bf16.mxu0 0
    %1144 = vmatpush1.bf16.msra.mxu0 %v1074
    %1145 = vmatprep.subr.bf16.mxu0 0
    %1146 = vmatpush1.bf16.msra.mxu0 %v1073
    %1147 = vmatprep.subr.bf16.mxu0 0
    %1148 = vmatpush1.bf16.msra.mxu0 %v1072
    %1149 = vmatprep.subr.bf16.mxu0 0
    %1150 = vmatpush1.bf16.msra.mxu0 %v1071
    %1151 = vmatprep.subr.bf16.mxu0 0
    %1152 = vmatpush2.bf16.msra.mxu0 %v1086
    %1153 = vmatprep.subr.bf16.mxu0 0
    %1154 = vmatpush2.bf16.msra.mxu0 %v1085
    %1155 = vmatprep.subr.bf16.mxu0 0
    %1156 = vmatpush2.bf16.msra.mxu0 %v1084
    %1157 = vmatprep.subr.bf16.mxu0 0
    %1158 = vmatpush2.bf16.msra.mxu0 %v1083
    %1159 = vmatprep.subr.bf16.mxu0 0
    %1160 = vmatpush2.bf16.msra.mxu0 %v1082
    %1161 = vmatprep.subr.bf16.mxu0 0
    %1162 = vmatpush2.bf16.msra.mxu0 %v1081
    %1163 = vmatprep.subr.bf16.mxu0 0
    %1164 = vmatpush2.bf16.msra.mxu0 %v1080
    %1165 = vmatprep.subr.bf16.mxu0 0
    %1166 = vmatpush2.bf16.msra.mxu0 %v1079
    %1167 = vmatprep.mubr.bf16.mxu0 %v869
    %1168 = vmatmul.mubr.bf16.gmra.mxu0 %v868
    %v1169 = vpop.f32.mrf.mxu0
    %v1170 = vadd.f32 %v941, %v1169
    %v1171 = vpop.f32.mrf.mxu0
    %v1172 = vpop.f32.mrf.mxu0
    %v1173 = vadd.f32 %v941, %v1172
    %v1174 = vpop.f32.mrf.mxu0
    %1175 = vdwg.mxu0
    %1176 = vmatprep.subr.bf16.mxu0 0
    %1177 = vmatpush1.bf16.msra.mxu0 %v1094
    %1178 = vmatprep.subr.bf16.mxu0 0
    %1179 = vmatpush1.bf16.msra.mxu0 %v1093
    %1180 = vmatprep.subr.bf16.mxu0 0
    %1181 = vmatpush1.bf16.msra.mxu0 %v1092
    %1182 = vmatprep.subr.bf16.mxu0 0
    %1183 = vmatpush1.bf16.msra.mxu0 %v1091
    %1184 = vmatprep.subr.bf16.mxu0 0
    %1185 = vmatpush1.bf16.msra.mxu0 %v1090
    %1186 = vmatprep.subr.bf16.mxu0 0
    %1187 = vmatpush1.bf16.msra.mxu0 %v1089
    %1188 = vmatprep.subr.bf16.mxu0 0
    %1189 = vmatpush1.bf16.msra.mxu0 %v1088
    %1190 = vmatprep.subr.bf16.mxu0 0
    %1191 = vmatpush1.bf16.msra.mxu0 %v1087
    %1192 = vmatprep.subr.bf16.mxu0 0
    %1193 = vmatpush2.bf16.msra.mxu0 %v1102
    %1194 = vmatprep.subr.bf16.mxu0 0
    %1195 = vmatpush2.bf16.msra.mxu0 %v1101
    %1196 = vmatprep.subr.bf16.mxu0 0
    %1197 = vmatpush2.bf16.msra.mxu0 %v1100
    %1198 = vmatprep.subr.bf16.mxu0 0
    %1199 = vmatpush2.bf16.msra.mxu0 %v1099
    %1200 = vmatprep.subr.bf16.mxu0 0
    %1201 = vmatpush2.bf16.msra.mxu0 %v1098
    %1202 = vmatprep.subr.bf16.mxu0 0
    %1203 = vmatpush2.bf16.msra.mxu0 %v1097
    %1204 = vmatprep.subr.bf16.mxu0 0
    %1205 = vmatpush2.bf16.msra.mxu0 %v1096
    %1206 = vmatprep.subr.bf16.mxu0 0
    %1207 = vmatpush2.bf16.msra.mxu0 %v1095
    %1208 = vmatprep.mubr.bf16.mxu0 %v871
    %1209 = vmatmul.mubr.bf16.gmra.mxu0 %v870
    %v1210 = vpop.f32.mrf.mxu0
    %v1211 = vadd.f32 %v1170, %v1210
    %v1212 = vpop.f32.mrf.mxu0
    %v1213 = vpop.f32.mrf.mxu0
    %v1214 = vadd.f32 %v1173, %v1213
    %v1215 = vpop.f32.mrf.mxu0
    %1216 = vdwg.mxu0
    %1217 = vmax.xlane.f32.xlu0 %v1211
    %v1218 = vpop.xlane.xlu0 %1217
    %1219 = vmax.xlane.f32.xlu0 %v1214
    %v1220 = vpop.xlane.xlu0 %1219
    %v1221 = vsub.f32 %v1211, %v1218
    %v1222 = vsub.f32 %v1214, %v1220
    %v1223 = vmul.f32 %v1221, 1.442695
    %v1224 = vpow.pop %v1223
    %v1225 = vmul.f32 %v1222, 1.442695
    %v1226 = vpow.pop %v1225
    %1227 = vadd.xlane.f32.xlu0 %v1224
    %v1228 = vpop.xlane.xlu0 %1227
    %1229 = vadd.xlane.f32.xlu0 %v1226
    %v1230 = vpop.xlane.xlu0 %1229
    %v1231 = vrcp.pop %v1228
    %v1232 = vmul.f32 %v1224, %v1231
    %v1233 = vrcp.pop %v1230
    %v1234 = vmul.f32 %v1226, %v1233
    %1235 = vst [vmem:[%s9] sm:$0xff] %v1232
    %1236 = vst [vmem:[%s9 + $0x8] sm:$0xff] %v1234
    // Predicated region
    $region54: #{cnn_classifier_forward.1} parent=1 // pred_check
      _
    $region55: #{cnn_classifier_forward.1} parent=1 // pred_check_branch
      %1238 = sbr.rel (0) target = $region57
    $region56: #{cnn_classifier_forward.1} parent=1 // pred_region
      _
    $region57: #{cnn_classifier_forward.1} parent=1 // pred_fallthru
      _
    // Predicated region
    $region58: #{cnn_classifier_forward.1} parent=1 // pred_check
      _
    $region59: #{cnn_classifier_forward.1} parent=1 // pred_check_branch
      %1240 = sbr.rel (0) target = $region61
    $region60: #{cnn_classifier_forward.1} parent=1 // pred_region
      _
    $region61: #{cnn_classifier_forward.1} parent=1 // pred_fallthru
      _
    %1241 = vsyncpa [#allocation3], 1
    %1242 = vsyncpa [#allocation5], 1
    %1243 = vsyncpa [#allocation8], 1

</llo_original>
